<compile_context>
chip_gen: v6e
topology: v6e:2x2x1
jax: 0.10.0
libtpu: 0.0.40
codegen_flags: <defaults>
</compile_context>

<pallas_src>
import functools

import jax
import jax.numpy as jnp
from jax.experimental import pallas as pl
from jax.experimental.pallas import tpu as pltpu


def _round_up(x, m):
    return ((x + m - 1) // m) * m


def _cdiv(a, b):
    return (a + b - 1) // b


def mlp_kernel(x_ref, w1_ref, b1_ref, w2_ref, b2_ref, w3_ref, b3_ref,
               o_ref, h1_ref):
    # fc1 + ReLU: MXU matmul (f32 or bf16 operands), f32 accumulation, staged in VMEM.
    h1_ref[...] = jnp.maximum(
        jnp.dot(x_ref[...], w1_ref[...], preferred_element_type=jnp.float32)
        + b1_ref[...],
        0.0,
    )
    # fc2 + ReLU: fed straight into fc3 (no explicit VMEM round-trip for h2).
    h2 = jnp.maximum(
        jnp.dot(h1_ref[...], w2_ref[...], preferred_element_type=jnp.float32)
        + b2_ref[...],
        0.0,
    )
    # fc3: lane-dense (128-wide) MXU matmul; only the first few lanes hit HBM.
    y = (jnp.dot(h2, w3_ref[...], preferred_element_type=jnp.float32)
         + b3_ref[...])
    o_ref[...] = y[:, :o_ref.shape[1]].astype(o_ref.dtype)


@functools.partial(jax.jit, static_argnames=("block_b", "use_bf16"))
def action_classifier_forward(x, params, *, block_b=1024, use_bf16=False):
    """x: (B, input_size) f32.  params: dict of (in,out) weights and (1,out) biases."""
    w1, b1, w2, b2, w3, b3 = (
        params["w1"], params["b1"], params["w2"],
        params["b2"], params["w3"], params["b3"],
    )
    B, F_in = x.shape
    H1 = w1.shape[1]          # 128
    H2 = w2.shape[1]          # 64
    out_dim = w3.shape[1]     # 3

    # Lane-dense MXU width for fc3 vs. narrow width actually written to HBM.
    OUT_MXU = max(128, _round_up(out_dim, 128))
    OUT_STORE = _round_up(out_dim, 8)

    # Batch tiling: fat tiles (>= block_b rows) to amortize per-grid-step
    # overhead, but at least 2 steps so v7x's two TensorCores both get work,
    # and TB derived from B so padded (dead) rows are minimal.
    sub = 16 if use_bf16 else 8
    num_steps = max(_cdiv(B, block_b), 2)
    TB = _round_up(_cdiv(B, num_steps), sub)
    B_pad = _round_up(B, TB)
    grid = (B_pad // TB,)

    # fc3 weight/bias padded to 128 lanes (exact zeros in the padded columns).
    w3p = jnp.zeros((H2, OUT_MXU), jnp.float32).at[:, :out_dim].set(w3)
    b3p = jnp.zeros((1, OUT_MXU), jnp.float32).at[:, :out_dim].set(b3)

    if use_bf16:
        # Halve the dominant x HBM read and make fc1 MXU-native bf16.
        # fc2/fc3 weights are tiny and VMEM-resident -> stay f32; biases, h1/h2
        # and the ReLU epilogue stay f32 (v5e has no bf16 VPU path).
        x = x.astype(jnp.bfloat16)
        w1 = w1.astype(jnp.bfloat16)

    if B_pad != B:
        # Padded rows produce relu(b) garbage; sliced off below.
        x = jnp.pad(x, ((0, B_pad - B), (0, 0)))

    x_bytes = 2 if use_bf16 else 4
    cost = pl.CostEstimate(
        flops=2 * B_pad * (F_in * H1 + H1 * H2 + H2 * OUT_MXU),
        transcendentals=0,
        bytes_accessed=(
            B_pad * F_in * x_bytes            # x read
            + B_pad * OUT_STORE * 4           # narrow output write
            + F_in * H1 * x_bytes             # w1
            + 4 * (H1 + H1 * H2 + H2 + H2 * OUT_MXU + OUT_MXU)
        ),
    )

    out = pl.pallas_call(
        mlp_kernel,
        out_shape=jax.ShapeDtypeStruct((B_pad, OUT_STORE), jnp.float32),
        grid_spec=pltpu.PrefetchScalarGridSpec(
            num_scalar_prefetch=0,
            grid=grid,
            in_specs=[
                # x: tiled over batch.
                pl.BlockSpec((TB, F_in), lambda i: (i, 0)),
                # Weights / biases: constant index_map -> VMEM-resident, no re-DMA.
                pl.BlockSpec((F_in, H1), lambda i: (0, 0)),
                pl.BlockSpec((1, H1), lambda i: (0, 0)),
                pl.BlockSpec((H1, H2), lambda i: (0, 0)),
                pl.BlockSpec((1, H2), lambda i: (0, 0)),
                pl.BlockSpec((H2, OUT_MXU), lambda i: (0, 0)),
                pl.BlockSpec((1, OUT_MXU), lambda i: (0, 0)),
            ],
            out_specs=pl.BlockSpec((TB, OUT_STORE), lambda i: (i, 0)),
            scratch_shapes=[
                pltpu.VMEM((TB, H1), jnp.float32),   # h1 staging
            ],
        ),
        compiler_params=pltpu.CompilerParams(
            dimension_semantics=("parallel",),
        ),
        cost_estimate=cost,
    )(x, w1, b1, w2, b2, w3p, b3p)

    return out[:B, :out_dim]


def init_params(key, input_size):
    """Deterministic init mimicking nn.Linear's uniform(-1/sqrt(fan_in), 1/sqrt(fan_in))."""
    dims = [(input_size, 128), (128, 64), (64, 3)]
    params = {}
    for i, (fan_in, fan_out) in enumerate(dims, start=1):
        key, kw, kb = jax.random.split(key, 3)
        bound = 1.0 / jnp.sqrt(jnp.float32(fan_in))
        params[f"w{i}"] = jax.random.uniform(
            kw, (fan_in, fan_out), jnp.float32, -bound, bound)
        params[f"b{i}"] = jax.random.uniform(
            kb, (1, fan_out), jnp.float32, -bound, bound)
    return params


def reference_forward(x, params):
    h1 = jnp.maximum(x @ params["w1"] + params["b1"], 0.0)
    h2 = jnp.maximum(h1 @ params["w2"] + params["b2"], 0.0)
    return h2 @ params["w3"] + params["b3"]


if __name__ == "__main__":
    key = jax.random.PRNGKey(0)
    key, kx1, kx2 = jax.random.split(key, 3)

    input_size = 32
    params = init_params(key, input_size)

    # Small batch: single grid step, f32 path, tight tolerance.
    x_small = jax.random.normal(kx1, (8, input_size), jnp.float32)
    out_small = jax.block_until_ready(action_classifier_forward(x_small, params))
    ref_small = reference_forward(x_small, params)
    assert out_small.shape == (8, 3)
    assert jnp.allclose(out_small, ref_small, atol=1e-4, rtol=1e-4)

    # Larger batch, not a multiple of the tile -> multi-step grid + padding path.
    x_big = jax.random.normal(kx2, (500, input_size), jnp.float32)
    out_big = jax.block_until_ready(action_classifier_forward(x_big, params))
    ref_big = reference_forward(x_big, params)
    assert out_big.shape == (500, 3)
    assert jnp.allclose(out_big, ref_big, atol=1e-4, rtol=1e-4)

    # bf16-operand fast path (f32 accumulation) for v6e/v7x: looser tolerance.
    out_bf16 = jax.block_until_ready(
        action_classifier_forward(x_big, params, use_bf16=True))
    assert out_bf16.shape == (500, 3)
    assert jnp.allclose(out_bf16, ref_big, atol=5e-2, rtol=5e-2)

    print("KERNEL_OK")
</pallas_src>

<mosaic_0001>
module attributes {stable_mosaic.version = 11 : i64} {
  func.func @mlp_kernel(%arg0: i32, %arg1: memref<8x32xf32, #tpu.memory_space<vmem>>, %arg2: memref<32x128xf32, #tpu.memory_space<vmem>>, %arg3: memref<1x128xf32, #tpu.memory_space<vmem>>, %arg4: memref<128x64xf32, #tpu.memory_space<vmem>>, %arg5: memref<1x64xf32, #tpu.memory_space<vmem>>, %arg6: memref<64x128xf32, #tpu.memory_space<vmem>>, %arg7: memref<1x128xf32, #tpu.memory_space<vmem>>, %arg8: memref<8x8xf32, #tpu.memory_space<vmem>>, %arg9: memref<8x128xf32, #tpu.memory_space<vmem>>) attributes {dimension_semantics = [#tpu.dimension_semantics<parallel>], iteration_bounds = array<i64: 1>, scalar_prefetch = 0 : i64, scratch_operands = 1 : i64, tpu.core_type = #tpu.core_type<tc>, window_params = [{transform_indices = @transform_0, window_bounds = array<i64: 8, 32>}, {pipeline_mode = #tpu.pipeline_mode<synchronous>, transform_indices = @transform_1, window_bounds = array<i64: 32, 128>}, {pipeline_mode = #tpu.pipeline_mode<synchronous>, transform_indices = @transform_2, window_bounds = array<i64: 1, 128>}, {pipeline_mode = #tpu.pipeline_mode<synchronous>, transform_indices = @transform_3, window_bounds = array<i64: 128, 64>}, {pipeline_mode = #tpu.pipeline_mode<synchronous>, transform_indices = @transform_4, window_bounds = array<i64: 1, 64>}, {pipeline_mode = #tpu.pipeline_mode<synchronous>, transform_indices = @transform_5, window_bounds = array<i64: 64, 128>}, {pipeline_mode = #tpu.pipeline_mode<synchronous>, transform_indices = @transform_6, window_bounds = array<i64: 1, 128>}, {transform_indices = @transform_7, window_bounds = array<i64: 8, 8>}]} {
    %c0 = arith.constant 0 : index
    %c0_0 = arith.constant 0 : index
    %0 = vector.load %arg1[%c0, %c0_0] : memref<8x32xf32, #tpu.memory_space<vmem>>, vector<8x32xf32>
    %c0_1 = arith.constant 0 : index
    %c0_2 = arith.constant 0 : index
    %1 = vector.load %arg2[%c0_1, %c0_2] : memref<32x128xf32, #tpu.memory_space<vmem>>, vector<32x128xf32>
    %cst = arith.constant dense<0.000000e+00> : vector<8x128xf32>
    %2 = tpu.matmul %0, %1, %cst {dimension_numbers = #tpu.dot_dimension_numbers<[1], [0], [0], [1], [0, 0, 1, 1], [], []>} : vector<8x32xf32>, vector<32x128xf32>, vector<8x128xf32> -> vector<8x128xf32>
    %c0_3 = arith.constant 0 : index
    %c0_4 = arith.constant 0 : index
    %3 = vector.load %arg3[%c0_3, %c0_4] : memref<1x128xf32, #tpu.memory_space<vmem>>, vector<1x128xf32>
    %4 = vector.broadcast %3 : vector<1x128xf32> to vector<8x128xf32>
    %5 = arith.addf %2, %4 : vector<8x128xf32>
    %cst_5 = arith.constant 0.000000e+00 : f32
    %6 = vector.broadcast %cst_5 : f32 to vector<8x128xf32>
    %7 = arith.maximumf %5, %6 : vector<8x128xf32>
    %c0_6 = arith.constant 0 : index
    %c0_7 = arith.constant 0 : index
    %8 = vector.load %arg9[%c0_6, %c0_7] : memref<8x128xf32, #tpu.memory_space<vmem>>, vector<8x128xf32>
    tpu.vector_store %arg9[%c0_6, %c0_7], %7 {strides = array<i32>} : memref<8x128xf32, #tpu.memory_space<vmem>>, vector<8x128xf32>,
    %c0_8 = arith.constant 0 : index
    %c0_9 = arith.constant 0 : index
    %9 = vector.load %arg9[%c0_8, %c0_9] : memref<8x128xf32, #tpu.memory_space<vmem>>, vector<8x128xf32>
    %c0_10 = arith.constant 0 : index
    %c0_11 = arith.constant 0 : index
    %10 = vector.load %arg4[%c0_10, %c0_11] : memref<128x64xf32, #tpu.memory_space<vmem>>, vector<128x64xf32>
    %cst_12 = arith.constant dense<0.000000e+00> : vector<8x64xf32>
    %11 = tpu.matmul %9, %10, %cst_12 {dimension_numbers = #tpu.dot_dimension_numbers<[1], [0], [0], [1], [0, 0, 1, 1], [], []>} : vector<8x128xf32>, vector<128x64xf32>, vector<8x64xf32> -> vector<8x64xf32>
    %c0_13 = arith.constant 0 : index
    %c0_14 = arith.constant 0 : index
    %12 = vector.load %arg5[%c0_13, %c0_14] : memref<1x64xf32, #tpu.memory_space<vmem>>, vector<1x64xf32>
    %13 = vector.broadcast %12 : vector<1x64xf32> to vector<8x64xf32>
    %14 = arith.addf %11, %13 : vector<8x64xf32>
    %cst_15 = arith.constant 0.000000e+00 : f32
    %15 = vector.broadcast %cst_15 : f32 to vector<8x64xf32>
    %16 = arith.maximumf %14, %15 : vector<8x64xf32>
    %c0_16 = arith.constant 0 : index
    %c0_17 = arith.constant 0 : index
    %17 = vector.load %arg6[%c0_16, %c0_17] : memref<64x128xf32, #tpu.memory_space<vmem>>, vector<64x128xf32>
    %cst_18 = arith.constant dense<0.000000e+00> : vector<8x128xf32>
    %18 = tpu.matmul %16, %17, %cst_18 {dimension_numbers = #tpu.dot_dimension_numbers<[1], [0], [0], [1], [0, 0, 1, 1], [], []>} : vector<8x64xf32>, vector<64x128xf32>, vector<8x128xf32> -> vector<8x128xf32>
    %c0_19 = arith.constant 0 : index
    %c0_20 = arith.constant 0 : index
    %19 = vector.load %arg7[%c0_19, %c0_20] : memref<1x128xf32, #tpu.memory_space<vmem>>, vector<1x128xf32>
    %20 = vector.broadcast %19 : vector<1x128xf32> to vector<8x128xf32>
    %21 = arith.addf %18, %20 : vector<8x128xf32>
    %22 = vector.extract_strided_slice %21 {offsets = [0, 0], sizes = [8, 8], strides = [1, 1]} : vector<8x128xf32> to vector<8x8xf32>
    %c0_21 = arith.constant 0 : index
    %c0_22 = arith.constant 0 : index
    %23 = vector.load %arg8[%c0_21, %c0_22] : memref<8x8xf32, #tpu.memory_space<vmem>>, vector<8x8xf32>
    tpu.vector_store %arg8[%c0_21, %c0_22], %22 {strides = array<i32>} : memref<8x8xf32, #tpu.memory_space<vmem>>, vector<8x8xf32>,
    return
  }
  func.func @transform_0(%arg0: i32) -> (i32, i32) {
    %c0_i32 = arith.constant 0 : i32
    %c0_i32_0 = arith.constant 0 : i32
    return %arg0, %c0_i32 : i32, i32
  }
  func.func @transform_1(%arg0: i32) -> (i32, i32) {
    %c0_i32 = arith.constant 0 : i32
    %c0_i32_0 = arith.constant 0 : i32
    %c0_i32_1 = arith.constant 0 : i32
    return %c0_i32, %c0_i32_0 : i32, i32
  }
  func.func @transform_2(%arg0: i32) -> (i32, i32) {
    %c0_i32 = arith.constant 0 : i32
    %c0_i32_0 = arith.constant 0 : i32
    %c0_i32_1 = arith.constant 0 : i32
    return %c0_i32, %c0_i32_0 : i32, i32
  }
  func.func @transform_3(%arg0: i32) -> (i32, i32) {
    %c0_i32 = arith.constant 0 : i32
    %c0_i32_0 = arith.constant 0 : i32
    %c0_i32_1 = arith.constant 0 : i32
    return %c0_i32, %c0_i32_0 : i32, i32
  }
  func.func @transform_4(%arg0: i32) -> (i32, i32) {
    %c0_i32 = arith.constant 0 : i32
    %c0_i32_0 = arith.constant 0 : i32
    %c0_i32_1 = arith.constant 0 : i32
    return %c0_i32, %c0_i32_0 : i32, i32
  }
  func.func @transform_5(%arg0: i32) -> (i32, i32) {
    %c0_i32 = arith.constant 0 : i32
    %c0_i32_0 = arith.constant 0 : i32
    %c0_i32_1 = arith.constant 0 : i32
    return %c0_i32, %c0_i32_0 : i32, i32
  }
  func.func @transform_6(%arg0: i32) -> (i32, i32) {
    %c0_i32 = arith.constant 0 : i32
    %c0_i32_0 = arith.constant 0 : i32
    %c0_i32_1 = arith.constant 0 : i32
    return %c0_i32, %c0_i32_0 : i32, i32
  }
  func.func @transform_7(%arg0: i32) -> (i32, i32) {
    %c0_i32 = arith.constant 0 : i32
    %c0_i32_0 = arith.constant 0 : i32
    return %arg0, %c0_i32 : i32, i32
  }
}

</mosaic_0001>

<llo_original>
// kernel: action_classifier_forward.1
$region0: #{action_classifier_forward.1}
  #allocation0 [shape = 'u32[]', space=smem, size = 0x4, offset = 0x4, fixed_abs, tag = 'smem constant byte address 0x4 - core index']
  #allocation1 [shape = 'u32[144,128]{1,0:T(1,128)}', space=vmem, size = 0x12000, scoped, tag = 'internal scratch']
  #allocation2 [shape = 'f32[8,128]{1,0:T(8,128)}', space=vmem, size = 0x1000, scoped, tag = 'scratch operand']
  %s0 = inlined_call_operand.vmem [shape: f32[8,32], index: 0, kind: input, shape index: {}]
  %s1 = inlined_call_operand.vmem [shape: f32[32,128], index: 1, kind: input, shape index: {}]
  %s2 = inlined_call_operand.vmem [shape: f32[1,128], index: 2, kind: input, shape index: {}]
  %s3 = inlined_call_operand.vmem [shape: f32[128,64], index: 3, kind: input, shape index: {}]
  %s4 = inlined_call_operand.vmem [shape: f32[1,64], index: 4, kind: input, shape index: {}]
  %s5 = inlined_call_operand.vmem [shape: f32[64,128], index: 5, kind: input, shape index: {}]
  %s6 = inlined_call_operand.vmem [shape: f32[1,128], index: 6, kind: input, shape index: {}]
  %s7 = inlined_call_operand.vmem [shape: f32[8,8], index: 7, kind: output, shape index: {}]
  %s8 = sld [smem:[#allocation0]]
  $region38: #{action_classifier_forward.1} parent=0
    _
  %s10 = ssub.s32 1, %s8
  %s11 = scalar_select 0, %s10, %s8
  // Predicated region
  $region2: #{action_classifier_forward.1} parent=0 // pred_check
    _
  $region3: #{action_classifier_forward.1} parent=0 // pred_check_branch
    %13 = sbr.rel (0) target = $region5
  $region4: #{action_classifier_forward.1} parent=0 // pred_region
    _
  $region5: #{action_classifier_forward.1} parent=0 // pred_fallthru
    _
  // Predicated region
  $region6: #{action_classifier_forward.1} parent=0 // pred_check
    _
  $region7: #{action_classifier_forward.1} parent=0 // pred_check_branch
    %15 = sbr.rel (0) target = $region9
  $region8: #{action_classifier_forward.1} parent=0 // pred_region
    _
  $region9: #{action_classifier_forward.1} parent=0 // pred_fallthru
    _
  // Predicated region
  $region10: #{action_classifier_forward.1} parent=0 // pred_check
    _
  $region11: #{action_classifier_forward.1} parent=0 // pred_check_branch
    %17 = sbr.rel (0) target = $region13
  $region12: #{action_classifier_forward.1} parent=0 // pred_region
    _
  $region13: #{action_classifier_forward.1} parent=0 // pred_fallthru
    _
  // Predicated region
  $region14: #{action_classifier_forward.1} parent=0 // pred_check
    _
  $region15: #{action_classifier_forward.1} parent=0 // pred_check_branch
    %19 = sbr.rel (0) target = $region17
  $region16: #{action_classifier_forward.1} parent=0 // pred_region
    _
  $region17: #{action_classifier_forward.1} parent=0 // pred_fallthru
    _
  // Predicated region
  $region18: #{action_classifier_forward.1} parent=0 // pred_check
    _
  $region19: #{action_classifier_forward.1} parent=0 // pred_check_branch
    %21 = sbr.rel (0) target = $region21
  $region20: #{action_classifier_forward.1} parent=0 // pred_region
    _
  $region21: #{action_classifier_forward.1} parent=0 // pred_fallthru
    _
  // Predicated region
  $region22: #{action_classifier_forward.1} parent=0 // pred_check
    _
  $region23: #{action_classifier_forward.1} parent=0 // pred_check_branch
    %23 = sbr.rel (0) target = $region25
  $region24: #{action_classifier_forward.1} parent=0 // pred_region
    _
  $region25: #{action_classifier_forward.1} parent=0 // pred_fallthru
    _
  // Predicated region
  $region26: #{action_classifier_forward.1} parent=0 // pred_check
    _
  $region27: #{action_classifier_forward.1} parent=0 // pred_check_branch
    %25 = sbr.rel (0) target = $region29
  $region28: #{action_classifier_forward.1} parent=0 // pred_region
    _
  $region29: #{action_classifier_forward.1} parent=0 // pred_fallthru
    _
  %v26 = vld [vmem:[%s0] sm:$0xff]
  %v27 = vld [vmem:[%s1] sm:$0xff]
  %v28 = vld [vmem:[%s1 + $0x8] sm:$0xff]
  %v29 = vld [vmem:[%s1 + $0x10] sm:$0xff]
  %v30 = vld [vmem:[%s1 + $0x18] sm:$0xff]
  %v31 = vld [vmem:[%s2] sm:$0x1]
  %v33 = vlaneseq
  %v34 = vshrl.u32 %v33, 7
  %v35 = vsub.s32 0, %v34
  %v36 = vrot.slane %v31, %v35
  %vm38 = vcmask 261120
  %v40 = vsel %vm38, %v26, 0
  %42 = vmatprep.subr.mxu0 0.0
  %43 = vmatpush1.msra.mxu0 0.0
  %44 = vmatprep.subr.mxu0 0.0
  %45 = vmatpush1.msra.mxu0 0.0
  %46 = vmatprep.subr.mxu0 0.0
  %47 = vmatpush1.msra.mxu0 0.0
  %48 = vmatprep.subr.mxu0 0.0
  %49 = vmatpush1.msra.mxu0 0.0
  %50 = vmatprep.subr.mxu0 0.0
  %51 = vmatpush1.msra.mxu0 0.0
  %52 = vmatprep.subr.mxu0 0.0
  %53 = vmatpush1.msra.mxu0 0.0
  %54 = vmatprep.subr.mxu0 0.0
  %55 = vmatpush1.msra.mxu0 0.0
  %56 = vmatprep.subr.mxu0 0.0
  %57 = vmatpush1.msra.mxu0 0.0
  %58 = vmatprep.subr.mxu0 0.0
  %59 = vmatpush1.msra.mxu0 0.0
  %60 = vmatprep.subr.mxu0 0.0
  %61 = vmatpush1.msra.mxu0 0.0
  %62 = vmatprep.subr.mxu0 0.0
  %63 = vmatpush1.msra.mxu0 0.0
  %64 = vmatprep.subr.mxu0 0.0
  %65 = vmatpush1.msra.mxu0 0.0
  %66 = vmatprep.subr.mxu0 0.0
  %67 = vmatpush1.msra.mxu0 %v30
  %68 = vmatprep.subr.mxu0 0.0
  %69 = vmatpush1.msra.mxu0 %v29
  %70 = vmatprep.subr.mxu0 0.0
  %71 = vmatpush1.msra.mxu0 %v28
  %72 = vmatprep.subr.mxu0 0.0
  %73 = vmatpush1.msra.mxu0 %v27
  %74 = vmatprep.subr.mxu0 0.0
  %75 = vmatpush2.msra.mxu0 0.0
  %76 = vmatprep.subr.mxu0 0.0
  %77 = vmatpush2.msra.mxu0 0.0
  %78 = vmatprep.subr.mxu0 0.0
  %79 = vmatpush2.msra.mxu0 0.0
  %80 = vmatprep.subr.mxu0 0.0
  %81 = vmatpush2.msra.mxu0 0.0
  %82 = vmatprep.subr.mxu0 0.0
  %83 = vmatpush2.msra.mxu0 0.0
  %84 = vmatprep.subr.mxu0 0.0
  %85 = vmatpush2.msra.mxu0 0.0
  %86 = vmatprep.subr.mxu0 0.0
  %87 = vmatpush2.msra.mxu0 0.0
  %88 = vmatprep.subr.mxu0 0.0
  %89 = vmatpush2.msra.mxu0 0.0
  %90 = vmatprep.subr.mxu0 0.0
  %91 = vmatpush2.msra.mxu0 0.0
  %92 = vmatprep.subr.mxu0 0.0
  %93 = vmatpush2.msra.mxu0 0.0
  %94 = vmatprep.subr.mxu0 0.0
  %95 = vmatpush2.msra.mxu0 0.0
  %96 = vmatprep.subr.mxu0 0.0
  %97 = vmatpush2.msra.mxu0 0.0
  %98 = vmatprep.subr.mxu0 0.0
  %99 = vmatpush2.msra.mxu0 0.0
  %100 = vmatprep.subr.mxu0 0.0
  %101 = vmatpush2.msra.mxu0 0.0
  %102 = vmatprep.subr.mxu0 0.0
  %103 = vmatpush2.msra.mxu0 0.0
  %104 = vmatprep.subr.mxu0 0.0
  %105 = vmatpush2.msra.mxu0 0.0
  %106 = vmatprep.mubr.f32.mxu0 0.0
  %107 = vmatmul.mubr.f32.gmra.mxu0 %v40
  %v108 = vpop.f32.mrf.mxu0
  %v109 = vadd.f32 %v36, %v108
  %v110 = vpop.f32.mrf.mxu0
  %111 = vdwg.mxu0
  %v112 = vmax.f32 %v109, 0.0
  %113 = vst [vmem:[#allocation2] sm:$0xff] %v112
  %v114 = vld [vmem:[#allocation2] sm:$0xff]
  %v115 = vld [vmem:[%s3] sm:$0xff]
  %v116 = vld [vmem:[%s3 + $0x8] sm:$0xff]
  %v117 = vld [vmem:[%s3 + $0x10] sm:$0xff]
  %v118 = vld [vmem:[%s3 + $0x18] sm:$0xff]
  %v119 = vld [vmem:[%s3 + $0x20] sm:$0xff]
  %v120 = vld [vmem:[%s3 + $0x28] sm:$0xff]
  %v121 = vld [vmem:[%s3 + $0x30] sm:$0xff]
  %v122 = vld [vmem:[%s3 + $0x38] sm:$0xff]
  %v123 = vld [vmem:[%s3 + $0x40] sm:$0xff]
  %v124 = vld [vmem:[%s3 + $0x48] sm:$0xff]
  %v125 = vld [vmem:[%s3 + $0x50] sm:$0xff]
  %v126 = vld [vmem:[%s3 + $0x58] sm:$0xff]
  %v127 = vld [vmem:[%s3 + $0x60] sm:$0xff]
  %v128 = vld [vmem:[%s3 + $0x68] sm:$0xff]
  %v129 = vld [vmem:[%s3 + $0x70] sm:$0xff]
  %v130 = vld [vmem:[%s3 + $0x78] sm:$0xff]
  %v131 = vld [vmem:[%s4] sm:$0x1]
  %v133 = vlaneseq
  %v134 = vshrl.u32 %v133, 7
  %v135 = vsub.s32 0, %v134
  %v136 = vrot.slane %v131, %v135
  %138 = vmatprep.subr.mxu0 0.0
  %139 = vmatpush1.msra.mxu0 %v130
  %140 = vmatprep.subr.mxu0 0.0
  %141 = vmatpush1.msra.mxu0 %v129
  %142 = vmatprep.subr.mxu0 0.0
  %143 = vmatpush1.msra.mxu0 %v128
  %144 = vmatprep.subr.mxu0 0.0
  %145 = vmatpush1.msra.mxu0 %v127
  %146 = vmatprep.subr.mxu0 0.0
  %147 = vmatpush1.msra.mxu0 %v126
  %148 = vmatprep.subr.mxu0 0.0
  %149 = vmatpush1.msra.mxu0 %v125
  %150 = vmatprep.subr.mxu0 0.0
  %151 = vmatpush1.msra.mxu0 %v124
  %152 = vmatprep.subr.mxu0 0.0
  %153 = vmatpush1.msra.mxu0 %v123
  %154 = vmatprep.subr.mxu0 0.0
  %155 = vmatpush1.msra.mxu0 %v122
  %156 = vmatprep.subr.mxu0 0.0
  %157 = vmatpush1.msra.mxu0 %v121
  %158 = vmatprep.subr.mxu0 0.0
  %159 = vmatpush1.msra.mxu0 %v120
  %160 = vmatprep.subr.mxu0 0.0
  %161 = vmatpush1.msra.mxu0 %v119
  %162 = vmatprep.subr.mxu0 0.0
  %163 = vmatpush1.msra.mxu0 %v118
  %164 = vmatprep.subr.mxu0 0.0
  %165 = vmatpush1.msra.mxu0 %v117
  %166 = vmatprep.subr.mxu0 0.0
  %167 = vmatpush1.msra.mxu0 %v116
  %168 = vmatprep.subr.mxu0 0.0
  %169 = vmatpush1.msra.mxu0 %v115
  %170 = vmatprep.subr.mxu0 0.0
  %171 = vmatpush2.msra.mxu0 0.0
  %172 = vmatprep.subr.mxu0 0.0
  %173 = vmatpush2.msra.mxu0 0.0
  %174 = vmatprep.subr.mxu0 0.0
  %175 = vmatpush2.msra.mxu0 0.0
  %176 = vmatprep.subr.mxu0 0.0
  %177 = vmatpush2.msra.mxu0 0.0
  %178 = vmatprep.subr.mxu0 0.0
  %179 = vmatpush2.msra.mxu0 0.0
  %180 = vmatprep.subr.mxu0 0.0
  %181 = vmatpush2.msra.mxu0 0.0
  %182 = vmatprep.subr.mxu0 0.0
  %183 = vmatpush2.msra.mxu0 0.0
  %184 = vmatprep.subr.mxu0 0.0
  %185 = vmatpush2.msra.mxu0 0.0
  %186 = vmatprep.subr.mxu0 0.0
  %187 = vmatpush2.msra.mxu0 0.0
  %188 = vmatprep.subr.mxu0 0.0
  %189 = vmatpush2.msra.mxu0 0.0
  %190 = vmatprep.subr.mxu0 0.0
  %191 = vmatpush2.msra.mxu0 0.0
  %192 = vmatprep.subr.mxu0 0.0
  %193 = vmatpush2.msra.mxu0 0.0
  %194 = vmatprep.subr.mxu0 0.0
  %195 = vmatpush2.msra.mxu0 0.0
  %196 = vmatprep.subr.mxu0 0.0
  %197 = vmatpush2.msra.mxu0 0.0
  %198 = vmatprep.subr.mxu0 0.0
  %199 = vmatpush2.msra.mxu0 0.0
  %200 = vmatprep.subr.mxu0 0.0
  %201 = vmatpush2.msra.mxu0 0.0
  %202 = vmatprep.mubr.f32.mxu0 0.0
  %203 = vmatmul.mubr.f32.gmra.mxu0 %v114
  %v204 = vpop.f32.mrf.mxu0
  %v205 = vadd.f32 %v136, %v204
  %v206 = vpop.f32.mrf.mxu0
  %207 = vdwg.mxu0
  %v208 = vmax.f32 %v205, 0.0
  %v209 = vld [vmem:[%s5] sm:$0xff]
  %v210 = vld [vmem:[%s5 + $0x8] sm:$0xff]
  %v211 = vld [vmem:[%s5 + $0x10] sm:$0xff]
  %v212 = vld [vmem:[%s5 + $0x18] sm:$0xff]
  %v213 = vld [vmem:[%s5 + $0x20] sm:$0xff]
  %v214 = vld [vmem:[%s5 + $0x28] sm:$0xff]
  %v215 = vld [vmem:[%s5 + $0x30] sm:$0xff]
  %v216 = vld [vmem:[%s5 + $0x38] sm:$0xff]
  %v217 = vld [vmem:[%s6] sm:$0x1]
  %v219 = vlaneseq
  %v220 = vshrl.u32 %v219, 7
  %v221 = vsub.s32 0, %v220
  %v222 = vrot.slane %v217, %v221
  %vm224 = vcmask 523264
  %v226 = vsel %vm224, %v208, 0
  %228 = vmatprep.subr.mxu0 0.0
  %229 = vmatpush1.msra.mxu0 0.0
  %230 = vmatprep.subr.mxu0 0.0
  %231 = vmatpush1.msra.mxu0 0.0
  %232 = vmatprep.subr.mxu0 0.0
  %233 = vmatpush1.msra.mxu0 0.0
  %234 = vmatprep.subr.mxu0 0.0
  %235 = vmatpush1.msra.mxu0 0.0
  %236 = vmatprep.subr.mxu0 0.0
  %237 = vmatpush1.msra.mxu0 0.0
  %238 = vmatprep.subr.mxu0 0.0
  %239 = vmatpush1.msra.mxu0 0.0
  %240 = vmatprep.subr.mxu0 0.0
  %241 = vmatpush1.msra.mxu0 0.0
  %242 = vmatprep.subr.mxu0 0.0
  %243 = vmatpush1.msra.mxu0 0.0
  %244 = vmatprep.subr.mxu0 0.0
  %245 = vmatpush1.msra.mxu0 %v216
  %246 = vmatprep.subr.mxu0 0.0
  %247 = vmatpush1.msra.mxu0 %v215
  %248 = vmatprep.subr.mxu0 0.0
  %249 = vmatpush1.msra.mxu0 %v214
  %250 = vmatprep.subr.mxu0 0.0
  %251 = vmatpush1.msra.mxu0 %v213
  %252 = vmatprep.subr.mxu0 0.0
  %253 = vmatpush1.msra.mxu0 %v212
  %254 = vmatprep.subr.mxu0 0.0
  %255 = vmatpush1.msra.mxu0 %v211
  %256 = vmatprep.subr.mxu0 0.0
  %257 = vmatpush1.msra.mxu0 %v210
  %258 = vmatprep.subr.mxu0 0.0
  %259 = vmatpush1.msra.mxu0 %v209
  %260 = vmatprep.subr.mxu0 0.0
  %261 = vmatpush2.msra.mxu0 0.0
  %262 = vmatprep.subr.mxu0 0.0
  %263 = vmatpush2.msra.mxu0 0.0
  %264 = vmatprep.subr.mxu0 0.0
  %265 = vmatpush2.msra.mxu0 0.0
  %266 = vmatprep.subr.mxu0 0.0
  %267 = vmatpush2.msra.mxu0 0.0
  %268 = vmatprep.subr.mxu0 0.0
  %269 = vmatpush2.msra.mxu0 0.0
  %270 = vmatprep.subr.mxu0 0.0
  %271 = vmatpush2.msra.mxu0 0.0
  %272 = vmatprep.subr.mxu0 0.0
  %273 = vmatpush2.msra.mxu0 0.0
  %274 = vmatprep.subr.mxu0 0.0
  %275 = vmatpush2.msra.mxu0 0.0
  %276 = vmatprep.subr.mxu0 0.0
  %277 = vmatpush2.msra.mxu0 0.0
  %278 = vmatprep.subr.mxu0 0.0
  %279 = vmatpush2.msra.mxu0 0.0
  %280 = vmatprep.subr.mxu0 0.0
  %281 = vmatpush2.msra.mxu0 0.0
  %282 = vmatprep.subr.mxu0 0.0
  %283 = vmatpush2.msra.mxu0 0.0
  %284 = vmatprep.subr.mxu0 0.0
  %285 = vmatpush2.msra.mxu0 0.0
  %286 = vmatprep.subr.mxu0 0.0
  %287 = vmatpush2.msra.mxu0 0.0
  %288 = vmatprep.subr.mxu0 0.0
  %289 = vmatpush2.msra.mxu0 0.0
  %290 = vmatprep.subr.mxu0 0.0
  %291 = vmatpush2.msra.mxu0 0.0
  %292 = vmatprep.mubr.f32.mxu0 0.0
  %293 = vmatmul.mubr.f32.gmra.mxu0 %v226
  %v294 = vpop.f32.mrf.mxu0
  %v295 = vadd.f32 %v222, %v294
  %v296 = vpop.f32.mrf.mxu0
  %297 = vdwg.mxu0
  %vm298 = vcmask 64512
  %299 = vst.msk [vmem:[%s7] sm:$0xff] %vm298, %v295
  // Predicated region
  $region30: #{action_classifier_forward.1} parent=0 // pred_check
    _
  $region31: #{action_classifier_forward.1} parent=0 // pred_check_branch
    %301 = sbr.rel (0) target = $region33
  $region32: #{action_classifier_forward.1} parent=0 // pred_region
    _
  $region33: #{action_classifier_forward.1} parent=0 // pred_fallthru
    _
  // Predicated region
  $region34: #{action_classifier_forward.1} parent=0 // pred_check
    _
  $region35: #{action_classifier_forward.1} parent=0 // pred_check_branch
    %303 = sbr.rel (0) target = $region37
  $region36: #{action_classifier_forward.1} parent=0 // pred_region
    _
  $region37: #{action_classifier_forward.1} parent=0 // pred_fallthru
    _

</llo_original>
